<compile_context>
chip_gen: v7x
topology: tpu7x:2x2x1
jax: 0.10.0
libtpu: 0.0.40
codegen_flags: <defaults>
</compile_context>

<pallas_src>
import functools

import jax
import jax.numpy as jnp
from jax.experimental import pallas as pl
from jax.experimental.pallas import tpu as pltpu


def _round_up(x, m):
    return ((x + m - 1) // m) * m


@functools.partial(jax.jit, static_argnames=("f", "k", "padding", "tile_n"))
def cnn_forward(x, weight, bias, *, f, k=5, padding=1, tile_n=128):
    """Pallas implementation of CNN.forward.

    Args:
      x:      (B, S, m_word, e_char) float32
      weight: (f, e_char, k) float32   -- PyTorch nn.Conv1d weight shape
      bias:   (f,) float32             -- PyTorch nn.Conv1d bias shape
    Returns:
      (B, S, f) float32
    """
    B, S, M, E = x.shape
    N = B * S
    C = E
    L_out = M + 2 * padding - k + 1
    assert L_out >= 1, "m_word too small for kernel_size/padding"

    L_out_r = _round_up(L_out, 8)        # output positions, sublane-aligned
    Lp_r = L_out_r + k - 1               # padded conv length (>= M + 2*padding)
    right_pad = Lp_r - padding - M       # >= padding >= 0
    KC = k * C                           # im2col contraction depth (~250)
    Fp = max(128, _round_up(f, 128))     # lane-dense output width

    # Tile the word axis; keep >= 2 grid steps when possible so both
    # TensorCores (v7x megacore) get work.
    TILE_N = max(8, min(_round_up(tile_n, 8), _round_up(N, 8)))
    if _round_up(N, TILE_N) == TILE_N and TILE_N >= 16:
        TILE_N = _round_up(TILE_N // 2, 8)
    N_pad = _round_up(N, TILE_N)

    # torch: x_reshaped.contiguous().view(S*B, e_char, m_word) == raw reshape
    x2 = x.reshape(N, C, M)
    # Single wrapper pass: NCL->NLC transpose + conv length padding + bf16 cast.
    x_nlc = jnp.transpose(x2, (0, 2, 1))                            # (N, M, C)
    x_pad = jnp.pad(x_nlc, ((0, N_pad - N), (padding, right_pad), (0, 0)))
    x_pad = x_pad.astype(jnp.bfloat16)                              # (N_pad, Lp_r, C)

    # Weights flattened to im2col order: row index = j*C + c, w[j*C+c, o] = weight[o, c, j].
    w_k = jnp.transpose(weight, (2, 1, 0)).reshape(KC, f)           # (k*C, f)
    w_k = jnp.pad(w_k, ((0, 0), (0, Fp - f))).astype(jnp.bfloat16)  # (k*C, Fp)
    b_k = jnp.pad(bias.astype(jnp.float32), (0, Fp - f)).reshape(1, Fp)

    def kernel(x_ref, w_ref, b_ref, o_ref):
        # x_ref: (TILE_N, Lp_r, C) bf16    w_ref: (KC, Fp) bf16
        # b_ref: (1, Fp) f32               o_ref: (TILE_N, Fp) f32
        # im2col: output position t uses padded positions t..t+k-1, so tap j
        # contributes x_ref[:, j:j+L_out_r, :]; concat over j gives column
        # index j*C + c, matching w_ref's row order.
        col = jnp.concatenate(
            [x_ref[:, j:j + L_out_r, :] for j in range(k)], axis=-1)
        conv = jnp.dot(col.reshape(TILE_N * L_out_r, KC), w_ref[...],
                       preferred_element_type=jnp.float32)
        conv = conv.reshape(TILE_N, L_out_r, Fp)
        # Max over the real time positions first (static slice excludes the
        # sublane-padding positions), then bias + ReLU on the reduced tensor.
        mx = jnp.max(conv[:, :L_out, :], axis=1)                    # (TILE_N, Fp)
        o_ref[...] = jnp.maximum(mx + b_ref[...], 0.0)

    flops = 2 * N_pad * L_out_r * KC * Fp
    bytes_accessed = (N_pad * Lp_r * C * 2          # bf16 input
                      + KC * Fp * 2 + Fp * 4        # weights + bias
                      + N_pad * Fp * 4)             # f32 output

    out = pl.pallas_call(
        kernel,
        out_shape=jax.ShapeDtypeStruct((N_pad, Fp), jnp.float32),
        grid=(N_pad // TILE_N,),
        in_specs=[
            pl.BlockSpec((TILE_N, Lp_r, C), lambda n: (n, 0, 0)),
            pl.BlockSpec((KC, Fp), lambda n: (0, 0)),    # resident weights
            pl.BlockSpec((1, Fp), lambda n: (0, 0)),     # resident bias
        ],
        out_specs=pl.BlockSpec((TILE_N, Fp), lambda n: (n, 0)),
        compiler_params=pltpu.CompilerParams(
            dimension_semantics=("parallel",),
            vmem_limit_bytes=48 * 1024 * 1024,   # safe on v5e/v6e (128 MiB) and v7x (64 MiB)
        ),
        cost_estimate=pl.CostEstimate(
            flops=flops, transcendentals=0, bytes_accessed=bytes_accessed),
    )(x_pad, w_k, b_k)

    # torch: .view(batch_size, sentence_length, f) == raw reshape
    return out[:N, :f].reshape(B, S, f)


def _reference_forward(x, weight, bias, *, f, k, padding):
    """Pure-JAX f32 reference mirroring the PyTorch module exactly."""
    B, S, M, E = x.shape
    N = B * S
    x2 = x.reshape(N, E, M)
    xp = jnp.pad(x2, ((0, 0), (0, 0), (padding, padding)))
    L_out = M + 2 * padding - k + 1
    cols = jnp.stack([xp[:, :, t:t + k] for t in range(L_out)], axis=2)  # (N, C, L_out, k)
    conv = jnp.einsum('nctj,ocj->not', cols, weight) + bias[None, :, None]
    return jnp.max(jax.nn.relu(conv), axis=2).reshape(B, S, f)


if __name__ == "__main__":
    key = jax.random.PRNGKey(0)
    kx, kw, kb = jax.random.split(key, 3)

    # Small shapes consistent with the module's forward signature.
    B, S, M, E = 2, 3, 8, 50          # batch, sentence_length, m_word, e_char
    f, k, padding = 16, 5, 1          # filters, kernel_size, padding

    x = jax.random.normal(kx, (B, S, M, E), dtype=jnp.float32)

    # Deterministic Conv1d parameter init (PyTorch-shaped: (f, e_char, k), (f,)).
    fan_in = E * k
    bound = 1.0 / (fan_in ** 0.5)
    weight = jax.random.uniform(kw, (f, E, k), jnp.float32, -bound, bound)
    bias = jax.random.uniform(kb, (f,), jnp.float32, -bound, bound)

    out = jax.block_until_ready(
        cnn_forward(x, weight, bias, f=f, k=k, padding=padding))

    ref = _reference_forward(x, weight, bias, f=f, k=k, padding=padding)
    assert out.shape == (B, S, f), out.shape
    # bf16 MXU operands vs. f32 reference -> loosened tolerance.
    assert jnp.allclose(out, ref, atol=5e-2, rtol=5e-2), \
        float(jnp.max(jnp.abs(out - ref)))

    print("KERNEL_OK")
</pallas_src>

<mosaic_0001>
module attributes {stable_mosaic.version = 11 : i64} {
  func.func @kernel(%arg0: i32, %arg1: memref<8x12x50xbf16, #tpu.memory_space<vmem>>, %arg2: memref<250x128xbf16, #tpu.memory_space<vmem>>, %arg3: memref<1x128xf32, #tpu.memory_space<vmem>>, %arg4: memref<8x128xf32, #tpu.memory_space<vmem>>) attributes {dimension_semantics = [#tpu.dimension_semantics<parallel>], iteration_bounds = array<i64: 1>, scalar_prefetch = 0 : i64, scratch_operands = 0 : i64, tpu.core_type = #tpu.core_type<tc>, window_params = [{transform_indices = @transform_0, window_bounds = array<i64: 8, 12, 50>}, {pipeline_mode = #tpu.pipeline_mode<synchronous>, transform_indices = @transform_1, window_bounds = array<i64: 250, 128>}, {pipeline_mode = #tpu.pipeline_mode<synchronous>, transform_indices = @transform_2, window_bounds = array<i64: 1, 128>}, {transform_indices = @transform_3, window_bounds = array<i64: 8, 128>}]} {
    %c0 = arith.constant 0 : index
    %c0_0 = arith.constant 0 : index
    %c0_1 = arith.constant 0 : index
    %0 = vector.load %arg1[%c0, %c0_0, %c0_1] : memref<8x12x50xbf16, #tpu.memory_space<vmem>>, vector<8x8x50xbf16>
    %c0_2 = arith.constant 0 : index
    %c1 = arith.constant 1 : index
    %c0_3 = arith.constant 0 : index
    %1 = vector.load %arg1[%c0_2, %c1, %c0_3] : memref<8x12x50xbf16, #tpu.memory_space<vmem>>, vector<8x8x50xbf16>
    %c0_4 = arith.constant 0 : index
    %c2 = arith.constant 2 : index
    %c0_5 = arith.constant 0 : index
    %2 = vector.load %arg1[%c0_4, %c2, %c0_5] : memref<8x12x50xbf16, #tpu.memory_space<vmem>>, vector<8x8x50xbf16>
    %c0_6 = arith.constant 0 : index
    %c3 = arith.constant 3 : index
    %c0_7 = arith.constant 0 : index
    %3 = vector.load %arg1[%c0_6, %c3, %c0_7] : memref<8x12x50xbf16, #tpu.memory_space<vmem>>, vector<8x8x50xbf16>
    %c0_8 = arith.constant 0 : index
    %c4 = arith.constant 4 : index
    %c0_9 = arith.constant 0 : index
    %4 = vector.load %arg1[%c0_8, %c4, %c0_9] : memref<8x12x50xbf16, #tpu.memory_space<vmem>>, vector<8x8x50xbf16>
    %5 = tpu.concatenate %0, %1, %2, %3, %4 in 2 : vector<8x8x50xbf16>, vector<8x8x50xbf16>, vector<8x8x50xbf16>, vector<8x8x50xbf16>, vector<8x8x50xbf16> -> vector<8x8x250xbf16>
    %6 = vector.shape_cast %5 : vector<8x8x250xbf16> to vector<64x250xbf16>
    %c0_10 = arith.constant 0 : index
    %c0_11 = arith.constant 0 : index
    %7 = vector.load %arg2[%c0_10, %c0_11] : memref<250x128xbf16, #tpu.memory_space<vmem>>, vector<250x128xbf16>
    %cst = arith.constant dense<0.000000e+00> : vector<64x128xf32>
    %8 = tpu.matmul %6, %7, %cst {dimension_numbers = #tpu.dot_dimension_numbers<[1], [0], [0], [1], [0, 0, 1, 1], [], []>} : vector<64x250xbf16>, vector<250x128xbf16>, vector<64x128xf32> -> vector<64x128xf32>
    %9 = vector.shape_cast %8 : vector<64x128xf32> to vector<8x8x128xf32>
    %10 = vector.extract_strided_slice %9 {offsets = [0, 0, 0], sizes = [8, 6, 128], strides = [1, 1, 1]} : vector<8x8x128xf32> to vector<8x6x128xf32>
    %cst_12 = arith.constant dense<0xFF800000> : vector<8x128xf32>
    %11 = vector.multi_reduction <maximumf>, %10, %cst_12 [1] : vector<8x6x128xf32> to vector<8x128xf32>
    %c0_13 = arith.constant 0 : index
    %c0_14 = arith.constant 0 : index
    %12 = vector.load %arg3[%c0_13, %c0_14] : memref<1x128xf32, #tpu.memory_space<vmem>>, vector<1x128xf32>
    %13 = vector.broadcast %12 : vector<1x128xf32> to vector<8x128xf32>
    %14 = arith.addf %11, %13 : vector<8x128xf32>
    %cst_15 = arith.constant 0.000000e+00 : f32
    %15 = vector.broadcast %cst_15 : f32 to vector<8x128xf32>
    %16 = arith.maximumf %14, %15 : vector<8x128xf32>
    %c0_16 = arith.constant 0 : index
    %c0_17 = arith.constant 0 : index
    %17 = vector.load %arg4[%c0_16, %c0_17] : memref<8x128xf32, #tpu.memory_space<vmem>>, vector<8x128xf32>
    tpu.vector_store %arg4[%c0_16, %c0_17], %16 {strides = array<i32>} : memref<8x128xf32, #tpu.memory_space<vmem>>, vector<8x128xf32>,
    return
  }
  func.func @transform_0(%arg0: i32) -> (i32, i32, i32) {
    %c0_i32 = arith.constant 0 : i32
    %c0_i32_0 = arith.constant 0 : i32
    %c0_i32_1 = arith.constant 0 : i32
    return %arg0, %c0_i32, %c0_i32_0 : i32, i32, i32
  }
  func.func @transform_1(%arg0: i32) -> (i32, i32) {
    %c0_i32 = arith.constant 0 : i32
    %c0_i32_0 = arith.constant 0 : i32
    %c0_i32_1 = arith.constant 0 : i32
    return %c0_i32, %c0_i32_0 : i32, i32
  }
  func.func @transform_2(%arg0: i32) -> (i32, i32) {
    %c0_i32 = arith.constant 0 : i32
    %c0_i32_0 = arith.constant 0 : i32
    %c0_i32_1 = arith.constant 0 : i32
    return %c0_i32, %c0_i32_0 : i32, i32
  }
  func.func @transform_3(%arg0: i32) -> (i32, i32) {
    %c0_i32 = arith.constant 0 : i32
    %c0_i32_0 = arith.constant 0 : i32
    return %arg0, %c0_i32 : i32, i32
  }
}

</mosaic_0001>

<llo_original>
// kernel: cnn_forward.1
$region0: #{cnn_forward.1}
  #allocation0 [shape = 'u32[]', space=smem, size = 0x4, offset = 0x4, fixed_abs, tag = 'smem constant byte address 0x4 - core index']
  #allocation1 [shape = 'u32[144,128]{1,0:T(1,128)}', space=vmem, size = 0x12000, scoped, tag = 'internal scratch']
  %s0 = inlined_call_operand.vmem [shape: bf16[8,12,50], index: 0, kind: input, shape index: {}]
  %s1 = inlined_call_operand.vmem [shape: bf16[250,128], index: 1, kind: input, shape index: {}]
  %s2 = inlined_call_operand.vmem [shape: f32[1,128], index: 2, kind: input, shape index: {}]
  %s3 = inlined_call_operand.vmem [shape: f32[8,128], index: 3, kind: output, shape index: {}]
  %s4 = sld [smem:[#allocation0]]
  $region22: #{cnn_forward.1} parent=0
    _
  %s6 = ssub.s32 1, %s4
  %s7 = scalar_select 0, %s6, %s4
  // Predicated region
  $region2: #{cnn_forward.1} parent=0 // pred_check
    _
  $region3: #{cnn_forward.1} parent=0 // pred_check_branch
    %9 = sbr.rel (0) target = $region5
  $region4: #{cnn_forward.1} parent=0 // pred_region
    _
  $region5: #{cnn_forward.1} parent=0 // pred_fallthru
    _
  // Predicated region
  $region6: #{cnn_forward.1} parent=0 // pred_check
    _
  $region7: #{cnn_forward.1} parent=0 // pred_check_branch
    %11 = sbr.rel (0) target = $region9
  $region8: #{cnn_forward.1} parent=0 // pred_region
    _
  $region9: #{cnn_forward.1} parent=0 // pred_fallthru
    _
  // Predicated region
  $region10: #{cnn_forward.1} parent=0 // pred_check
    _
  $region11: #{cnn_forward.1} parent=0 // pred_check_branch
    %13 = sbr.rel (0) target = $region13
  $region12: #{cnn_forward.1} parent=0 // pred_region
    _
  $region13: #{cnn_forward.1} parent=0 // pred_fallthru
    _
  %v15 = vld [vmem:[%s0] sm:$0xf]
  %v16 = vld [vmem:[%s0 + $0x8] sm:$0xf]
  %v17 = vld [vmem:[%s0 + $0x10] sm:$0xf]
  %v18 = vld [vmem:[%s0 + $0x18] sm:$0xf]
  %v19 = vld [vmem:[%s0 + $0x20] sm:$0xf]
  %v20 = vld [vmem:[%s0 + $0x28] sm:$0xf]
  %v21 = vld [vmem:[%s0 + $0x30] sm:$0xf]
  %v22 = vld [vmem:[%s0 + $0x38] sm:$0xf]
  %v23 = vld [vmem:[%s0 + $0x4] sm:$0x1]
  %v24 = vld [vmem:[%s0 + $0xc] sm:$0x1]
  %v25 = vld [vmem:[%s0 + $0x14] sm:$0x1]
  %v26 = vld [vmem:[%s0 + $0x1c] sm:$0x1]
  %v27 = vld [vmem:[%s0 + $0x24] sm:$0x1]
  %v28 = vld [vmem:[%s0 + $0x2c] sm:$0x1]
  %v29 = vld [vmem:[%s0 + $0x34] sm:$0x1]
  %v30 = vld [vmem:[%s0 + $0x3c] sm:$0x1]
  %v31 = vld [vmem:[%s0] sm:$0xe]
  %v32 = vld [vmem:[%s0 + $0x8] sm:$0xe]
  %v33 = vld [vmem:[%s0 + $0x10] sm:$0xe]
  %v34 = vld [vmem:[%s0 + $0x18] sm:$0xe]
  %v35 = vld [vmem:[%s0 + $0x20] sm:$0xe]
  %v36 = vld [vmem:[%s0 + $0x28] sm:$0xe]
  %v37 = vld [vmem:[%s0 + $0x30] sm:$0xe]
  %v38 = vld [vmem:[%s0 + $0x38] sm:$0xe]
  %v39 = vld [vmem:[%s0 + $0x4] sm:$0x3]
  %v40 = vld [vmem:[%s0 + $0xc] sm:$0x3]
  %v41 = vld [vmem:[%s0 + $0x14] sm:$0x3]
  %v42 = vld [vmem:[%s0 + $0x1c] sm:$0x3]
  %v43 = vld [vmem:[%s0 + $0x24] sm:$0x3]
  %v44 = vld [vmem:[%s0 + $0x2c] sm:$0x3]
  %v45 = vld [vmem:[%s0 + $0x34] sm:$0x3]
  %v46 = vld [vmem:[%s0 + $0x3c] sm:$0x3]
  %v47 = vld [vmem:[%s0] sm:$0xc]
  %v48 = vld [vmem:[%s0 + $0x8] sm:$0xc]
  %v49 = vld [vmem:[%s0 + $0x10] sm:$0xc]
  %v50 = vld [vmem:[%s0 + $0x18] sm:$0xc]
  %v51 = vld [vmem:[%s0 + $0x20] sm:$0xc]
  %v52 = vld [vmem:[%s0 + $0x28] sm:$0xc]
  %v53 = vld [vmem:[%s0 + $0x30] sm:$0xc]
  %v54 = vld [vmem:[%s0 + $0x38] sm:$0xc]
  %v71 = vunpack.c.l.b16 %v15
  %v72 = vunpack.c.l.b16 %v23
  %v73 = vunpack.c.l.b16 %v16
  %v74 = vunpack.c.l.b16 %v24
  %v75 = vunpack.c.l.b16 %v17
  %v76 = vunpack.c.l.b16 %v25
  %v77 = vunpack.c.l.b16 %v18
  %v78 = vunpack.c.l.b16 %v26
  %v79 = vunpack.c.l.b16 %v19
  %v80 = vunpack.c.l.b16 %v27
  %v81 = vunpack.c.l.b16 %v20
  %v82 = vunpack.c.l.b16 %v28
  %v83 = vunpack.c.l.b16 %v21
  %v84 = vunpack.c.l.b16 %v29
  %v85 = vunpack.c.l.b16 %v22
  %v86 = vunpack.c.l.b16 %v30
  %v87 = vpack.c.b16 %v72, %v71
  %v88 = vpack.c.b16 %v74, %v73
  %v89 = vpack.c.b16 %v76, %v75
  %v90 = vpack.c.b16 %v78, %v77
  %v91 = vpack.c.b16 %v80, %v79
  %v92 = vpack.c.b16 %v82, %v81
  %v93 = vpack.c.b16 %v84, %v83
  %v94 = vpack.c.b16 %v86, %v85
  %v96 = vshrl.u32 %v87, 16
  %v98 = vshll.u32 %v87, 16
  %v100 = vrot.slane %v98, 1
  %v101 = vor.u32 %v96, %v100
  %v103 = vshrl.u32 %v88, 16
  %v105 = vshll.u32 %v88, 16
  %v107 = vrot.slane %v105, 1
  %v108 = vor.u32 %v103, %v107
  %v110 = vshrl.u32 %v89, 16
  %v112 = vshll.u32 %v89, 16
  %v114 = vrot.slane %v112, 1
  %v115 = vor.u32 %v110, %v114
  %v117 = vshrl.u32 %v90, 16
  %v119 = vshll.u32 %v90, 16
  %v121 = vrot.slane %v119, 1
  %v122 = vor.u32 %v117, %v121
  %v124 = vshrl.u32 %v91, 16
  %v126 = vshll.u32 %v91, 16
  %v128 = vrot.slane %v126, 1
  %v129 = vor.u32 %v124, %v128
  %v131 = vshrl.u32 %v92, 16
  %v133 = vshll.u32 %v92, 16
  %v135 = vrot.slane %v133, 1
  %v136 = vor.u32 %v131, %v135
  %v138 = vshrl.u32 %v93, 16
  %v140 = vshll.u32 %v93, 16
  %v142 = vrot.slane %v140, 1
  %v143 = vor.u32 %v138, %v142
  %v145 = vshrl.u32 %v94, 16
  %v147 = vshll.u32 %v94, 16
  %v149 = vrot.slane %v147, 1
  %v150 = vor.u32 %v145, %v149
  %151 = vrot.lane.b32.xlu0 %v101, 50
  %v152 = vpop.permute.xlu0 %151
  %153 = vrot.lane.b32.xlu0 %v108, 50
  %v154 = vpop.permute.xlu0 %153
  %155 = vrot.lane.b32.xlu0 %v115, 50
  %v156 = vpop.permute.xlu0 %155
  %157 = vrot.lane.b32.xlu0 %v122, 50
  %v158 = vpop.permute.xlu0 %157
  %159 = vrot.lane.b32.xlu0 %v129, 50
  %v160 = vpop.permute.xlu0 %159
  %161 = vrot.lane.b32.xlu0 %v136, 50
  %v162 = vpop.permute.xlu0 %161
  %163 = vrot.lane.b32.xlu0 %v143, 50
  %v164 = vpop.permute.xlu0 %163
  %165 = vrot.lane.b32.xlu0 %v150, 50
  %v166 = vpop.permute.xlu0 %165
  %v175 = vunpack.c.l.b16 %v31
  %v176 = vunpack.c.l.b16 %v32
  %v177 = vunpack.c.l.b16 %v33
  %v178 = vunpack.c.l.b16 %v34
  %v179 = vunpack.c.l.b16 %v35
  %v180 = vunpack.c.l.b16 %v36
  %v181 = vunpack.c.l.b16 %v37
  %v182 = vunpack.c.l.b16 %v38
  %v183 = vpack.c.b16 %v72, %v175
  %v184 = vpack.c.b16 %v74, %v176
  %v185 = vpack.c.b16 %v76, %v177
  %v186 = vpack.c.b16 %v78, %v178
  %v187 = vpack.c.b16 %v80, %v179
  %v188 = vpack.c.b16 %v82, %v180
  %v189 = vpack.c.b16 %v84, %v181
  %v190 = vpack.c.b16 %v86, %v182
  %v191 = vrot.slane %v183, 1
  %v192 = vrot.slane %v184, 1
  %v193 = vrot.slane %v185, 1
  %v194 = vrot.slane %v186, 1
  %v195 = vrot.slane %v187, 1
  %v196 = vrot.slane %v188, 1
  %v197 = vrot.slane %v189, 1
  %v198 = vrot.slane %v190, 1
  %199 = vrot.lane.b32.xlu0 %v191, 100
  %v200 = vpop.permute.xlu0 %199
  %201 = vrot.lane.b32.xlu0 %v192, 100
  %v202 = vpop.permute.xlu0 %201
  %203 = vrot.lane.b32.xlu0 %v193, 100
  %v204 = vpop.permute.xlu0 %203
  %205 = vrot.lane.b32.xlu0 %v194, 100
  %v206 = vpop.permute.xlu0 %205
  %207 = vrot.lane.b32.xlu0 %v195, 100
  %v208 = vpop.permute.xlu0 %207
  %209 = vrot.lane.b32.xlu0 %v196, 100
  %v210 = vpop.permute.xlu0 %209
  %211 = vrot.lane.b32.xlu0 %v197, 100
  %v212 = vpop.permute.xlu0 %211
  %213 = vrot.lane.b32.xlu0 %v198, 100
  %v214 = vpop.permute.xlu0 %213
  %v223 = vunpack.c.l.b16 %v39
  %v224 = vunpack.c.l.b16 %v40
  %v225 = vunpack.c.l.b16 %v41
  %v226 = vunpack.c.l.b16 %v42
  %v227 = vunpack.c.l.b16 %v43
  %v228 = vunpack.c.l.b16 %v44
  %v229 = vunpack.c.l.b16 %v45
  %v230 = vunpack.c.l.b16 %v46
  %v231 = vpack.c.b16 %v223, %v175
  %v232 = vpack.c.b16 %v224, %v176
  %v233 = vpack.c.b16 %v225, %v177
  %v234 = vpack.c.b16 %v226, %v178
  %v235 = vpack.c.b16 %v227, %v179
  %v236 = vpack.c.b16 %v228, %v180
  %v237 = vpack.c.b16 %v229, %v181
  %v238 = vpack.c.b16 %v230, %v182
  %v240 = vshrl.u32 %v231, 16
  %v242 = vrot.slane %v240, 1
  %v243 = vshll.u32 %v231, 16
  %v245 = vrot.slane %v243, 2
  %v246 = vor.u32 %v242, %v245
  %v248 = vshrl.u32 %v232, 16
  %v250 = vrot.slane %v248, 1
  %v251 = vshll.u32 %v232, 16
  %v253 = vrot.slane %v251, 2
  %v254 = vor.u32 %v250, %v253
  %v256 = vshrl.u32 %v233, 16
  %v258 = vrot.slane %v256, 1
  %v259 = vshll.u32 %v233, 16
  %v261 = vrot.slane %v259, 2
  %v262 = vor.u32 %v258, %v261
  %v264 = vshrl.u32 %v234, 16
  %v266 = vrot.slane %v264, 1
  %v267 = vshll.u32 %v234, 16
  %v269 = vrot.slane %v267, 2
  %v270 = vor.u32 %v266, %v269
  %v272 = vshrl.u32 %v235, 16
  %v274 = vrot.slane %v272, 1
  %v275 = vshll.u32 %v235, 16
  %v277 = vrot.slane %v275, 2
  %v278 = vor.u32 %v274, %v277
  %v280 = vshrl.u32 %v236, 16
  %v282 = vrot.slane %v280, 1
  %v283 = vshll.u32 %v236, 16
  %v285 = vrot.slane %v283, 2
  %v286 = vor.u32 %v282, %v285
  %v288 = vshrl.u32 %v237, 16
  %v290 = vrot.slane %v288, 1
  %v291 = vshll.u32 %v237, 16
  %v293 = vrot.slane %v291, 2
  %v294 = vor.u32 %v290, %v293
  %v296 = vshrl.u32 %v238, 16
  %v298 = vrot.slane %v296, 1
  %v299 = vshll.u32 %v238, 16
  %v301 = vrot.slane %v299, 2
  %v302 = vor.u32 %v298, %v301
  %303 = vrot.lane.b32.xlu0 %v246, 22
  %v304 = vpop.permute.xlu0 %303
  %305 = vrot.lane.b32.xlu0 %v254, 22
  %v306 = vpop.permute.xlu0 %305
  %307 = vrot.lane.b32.xlu0 %v262, 22
  %v308 = vpop.permute.xlu0 %307
  %309 = vrot.lane.b32.xlu0 %v270, 22
  %v310 = vpop.permute.xlu0 %309
  %311 = vrot.lane.b32.xlu0 %v278, 22
  %v312 = vpop.permute.xlu0 %311
  %313 = vrot.lane.b32.xlu0 %v286, 22
  %v314 = vpop.permute.xlu0 %313
  %315 = vrot.lane.b32.xlu0 %v294, 22
  %v316 = vpop.permute.xlu0 %315
  %317 = vrot.lane.b32.xlu0 %v302, 22
  %v318 = vpop.permute.xlu0 %317
  %v327 = vunpack.c.l.b16 %v47
  %v328 = vunpack.c.l.b16 %v48
  %v329 = vunpack.c.l.b16 %v49
  %v330 = vunpack.c.l.b16 %v50
  %v331 = vunpack.c.l.b16 %v51
  %v332 = vunpack.c.l.b16 %v52
  %v333 = vunpack.c.l.b16 %v53
  %v334 = vunpack.c.l.b16 %v54
  %v335 = vpack.c.b16 %v223, %v327
  %v336 = vpack.c.b16 %v224, %v328
  %v337 = vpack.c.b16 %v225, %v329
  %v338 = vpack.c.b16 %v226, %v330
  %v339 = vpack.c.b16 %v227, %v331
  %v340 = vpack.c.b16 %v228, %v332
  %v341 = vpack.c.b16 %v229, %v333
  %v342 = vpack.c.b16 %v230, %v334
  %v343 = vrot.slane %v335, 2
  %v344 = vrot.slane %v336, 2
  %v345 = vrot.slane %v337, 2
  %v346 = vrot.slane %v338, 2
  %v347 = vrot.slane %v339, 2
  %v348 = vrot.slane %v340, 2
  %v349 = vrot.slane %v341, 2
  %v350 = vrot.slane %v342, 2
  %351 = vrot.lane.b32.xlu0 %v343, 72
  %v352 = vpop.permute.xlu0 %351
  %353 = vrot.lane.b32.xlu0 %v344, 72
  %v354 = vpop.permute.xlu0 %353
  %355 = vrot.lane.b32.xlu0 %v345, 72
  %v356 = vpop.permute.xlu0 %355
  %357 = vrot.lane.b32.xlu0 %v346, 72
  %v358 = vpop.permute.xlu0 %357
  %359 = vrot.lane.b32.xlu0 %v347, 72
  %v360 = vpop.permute.xlu0 %359
  %361 = vrot.lane.b32.xlu0 %v348, 72
  %v362 = vpop.permute.xlu0 %361
  %363 = vrot.lane.b32.xlu0 %v349, 72
  %v364 = vpop.permute.xlu0 %363
  %365 = vrot.lane.b32.xlu0 %v350, 72
  %v366 = vpop.permute.xlu0 %365
  %vm367 = vcmask 408576
  %v370 = vsel %vm367, %v15, %v152
  %v373 = vsel %vm367, %v16, %v154
  %v376 = vsel %vm367, %v17, %v156
  %v379 = vsel %vm367, %v18, %v158
  %v382 = vsel %vm367, %v19, %v160
  %v385 = vsel %vm367, %v20, %v162
  %v388 = vsel %vm367, %v21, %v164
  %v391 = vsel %vm367, %v22, %v166
  %vm392 = vcmask 818176
  %v394 = vsel %vm392, %v370, %v200
  %v396 = vsel %vm392, %v373, %v202
  %v398 = vsel %vm392, %v376, %v204
  %v400 = vsel %vm392, %v379, %v206
  %v402 = vsel %vm392, %v382, %v208
  %v404 = vsel %vm392, %v385, %v210
  %v406 = vsel %vm392, %v388, %v212
  %v408 = vsel %vm392, %v391, %v214
  %vm409 = vcmask 179200
  %v411 = vsel %vm409, %v200, %v304
  %v413 = vsel %vm409, %v202, %v306
  %v415 = vsel %vm409, %v204, %v308
  %v417 = vsel %vm409, %v206, %v310
  %v419 = vsel %vm409, %v208, %v312
  %v421 = vsel %vm409, %v210, %v314
  %v423 = vsel %vm409, %v212, %v316
  %v425 = vsel %vm409, %v214, %v318
  %vm426 = vcmask 588800
  %v428 = vsel %vm426, %v411, %v352
  %v430 = vsel %vm426, %v413, %v354
  %v432 = vsel %vm426, %v415, %v356
  %v434 = vsel %vm426, %v417, %v358
  %v436 = vsel %vm426, %v419, %v360
  %v438 = vsel %vm426, %v421, %v362
  %v440 = vsel %vm426, %v423, %v364
  %v442 = vsel %vm426, %v425, %v366
  %v459 = vunpack.c.l.b16 %v394
  %v460 = vunpack.c.l.b16 %v428
  %v461 = vunpack.c.l.b16 %v396
  %v462 = vunpack.c.l.b16 %v430
  %v463 = vunpack.c.l.b16 %v398
  %v464 = vunpack.c.l.b16 %v432
  %v465 = vunpack.c.l.b16 %v400
  %v466 = vunpack.c.l.b16 %v434
  %v467 = vunpack.c.l.b16 %v402
  %v468 = vunpack.c.l.b16 %v436
  %v469 = vunpack.c.l.b16 %v404
  %v470 = vunpack.c.l.b16 %v438
  %v471 = vunpack.c.l.b16 %v406
  %v472 = vunpack.c.l.b16 %v440
  %v473 = vunpack.c.l.b16 %v408
  %v474 = vunpack.c.l.b16 %v442
  %v475 = vld [vmem:[%s1] sm:$0xf]
  %v476 = vld [vmem:[%s1 + $0x4] sm:$0xf]
  %v477 = vld [vmem:[%s1 + $0x8] sm:$0xf]
  %v478 = vld [vmem:[%s1 + $0xc] sm:$0xf]
  %v479 = vld [vmem:[%s1 + $0x10] sm:$0xf]
  %v480 = vld [vmem:[%s1 + $0x14] sm:$0xf]
  %v481 = vld [vmem:[%s1 + $0x18] sm:$0xf]
  %v482 = vld [vmem:[%s1 + $0x1c] sm:$0xf]
  %v483 = vld [vmem:[%s1 + $0x20] sm:$0xf]
  %v484 = vld [vmem:[%s1 + $0x24] sm:$0xf]
  %v485 = vld [vmem:[%s1 + $0x28] sm:$0xf]
  %v486 = vld [vmem:[%s1 + $0x2c] sm:$0xf]
  %v487 = vld [vmem:[%s1 + $0x30] sm:$0xf]
  %v488 = vld [vmem:[%s1 + $0x34] sm:$0xf]
  %v489 = vld [vmem:[%s1 + $0x38] sm:$0xf]
  %v490 = vld [vmem:[%s1 + $0x3c] sm:$0xf]
  %v491 = vld [vmem:[%s1 + $0x40] sm:$0xf]
  %v492 = vld [vmem:[%s1 + $0x44] sm:$0xf]
  %v493 = vld [vmem:[%s1 + $0x48] sm:$0xf]
  %v494 = vld [vmem:[%s1 + $0x4c] sm:$0xf]
  %v495 = vld [vmem:[%s1 + $0x50] sm:$0xf]
  %v496 = vld [vmem:[%s1 + $0x54] sm:$0xf]
  %v497 = vld [vmem:[%s1 + $0x58] sm:$0xf]
  %v498 = vld [vmem:[%s1 + $0x5c] sm:$0xf]
  %v499 = vld [vmem:[%s1 + $0x60] sm:$0xf]
  %v500 = vld [vmem:[%s1 + $0x64] sm:$0xf]
  %v501 = vld [vmem:[%s1 + $0x68] sm:$0xf]
  %v502 = vld [vmem:[%s1 + $0x6c] sm:$0xf]
  %v503 = vld [vmem:[%s1 + $0x70] sm:$0xf]
  %v504 = vld [vmem:[%s1 + $0x74] sm:$0xf]
  %v505 = vld [vmem:[%s1 + $0x78] sm:$0xf]
  %v506 = vld [vmem:[%s1 + $0x7c] sm:$0x1]
  %v507 = vpack.c.b16 %v461, %v459
  %v508 = vpack.c.b16 %v462, %v460
  %v509 = vpack.c.b16 %v465, %v463
  %v510 = vpack.c.b16 %v466, %v464
  %v511 = vpack.c.b16 %v469, %v467
  %v512 = vpack.c.b16 %v470, %v468
  %v513 = vpack.c.b16 %v473, %v471
  %v514 = vpack.c.b16 %v474, %v472
  %v551 = vunpack.c.l.b16 %v475
  %v552 = vunpack.c.l.b16 %v476
  %v553 = vunpack.c.l.b16 %v477
  %v554 = vunpack.c.l.b16 %v478
  %v555 = vunpack.c.l.b16 %v479
  %v556 = vunpack.c.l.b16 %v480
  %v557 = vunpack.c.l.b16 %v481
  %v558 = vunpack.c.l.b16 %v482
  %v559 = vunpack.c.l.b16 %v483
  %v560 = vunpack.c.l.b16 %v484
  %v561 = vunpack.c.l.b16 %v485
  %v562 = vunpack.c.l.b16 %v486
  %v563 = vunpack.c.l.b16 %v487
  %v564 = vunpack.c.l.b16 %v488
  %v565 = vunpack.c.l.b16 %v489
  %v566 = vunpack.c.l.b16 %v490
  %v567 = vunpack.c.l.b16 %v491
  %v568 = vunpack.c.l.b16 %v492
  %v569 = vunpack.c.l.b16 %v493
  %v570 = vunpack.c.l.b16 %v494
  %v571 = vunpack.c.l.b16 %v495
  %v572 = vunpack.c.l.b16 %v496
  %v573 = vunpack.c.l.b16 %v497
  %v574 = vunpack.c.l.b16 %v498
  %v575 = vunpack.c.l.b16 %v499
  %v576 = vunpack.c.l.b16 %v500
  %v577 = vunpack.c.l.b16 %v501
  %v578 = vunpack.c.l.b16 %v502
  %v579 = vunpack.c.l.b16 %v503
  %v580 = vunpack.c.l.b16 %v504
  %v581 = vunpack.c.l.b16 %v505
  %v582 = vunpack.c.l.b16 %v506
  %v583 = vpack.c.b16 %v552, %v551
  %v584 = vpack.c.b16 %v554, %v553
  %v585 = vpack.c.b16 %v556, %v555
  %v586 = vpack.c.b16 %v558, %v557
  %v587 = vpack.c.b16 %v560, %v559
  %v588 = vpack.c.b16 %v562, %v561
  %v589 = vpack.c.b16 %v564, %v563
  %v590 = vpack.c.b16 %v566, %v565
  %v591 = vpack.c.b16 %v568, %v567
  %v592 = vpack.c.b16 %v570, %v569
  %v593 = vpack.c.b16 %v572, %v571
  %v594 = vpack.c.b16 %v574, %v573
  %v595 = vpack.c.b16 %v576, %v575
  %v596 = vpack.c.b16 %v578, %v577
  %v597 = vpack.c.b16 %v580, %v579
  %v598 = vpack.c.b16 %v582, %v581
  %vm614 = vcmask 998400
  %v616 = vsel %vm614, %v508, 0
  %v619 = vsel %vm614, %v510, 0
  %v622 = vsel %vm614, %v512, 0
  %v625 = vsel %vm614, %v514, 0
  %vm627 = vcmask 1044480
  %v629 = vsel %vm627, %v598, 0
  %631 = vmatprep.subr.bf16.mxu0 0
  %632 = vmatpush1.bf16.msra.mxu0 %v583
  %633 = vmatprep.subr.bf16.mxu0 0
  %634 = vmatpush1.bf16.msra.mxu0 %v584
  %635 = vmatprep.subr.bf16.mxu0 0
  %636 = vmatpush1.bf16.msra.mxu0 %v585
  %637 = vmatprep.subr.bf16.mxu0 0
  %638 = vmatpush1.bf16.msra.mxu0 %v586
  %639 = vmatprep.subr.bf16.mxu0 0
  %640 = vmatpush1.bf16.msra.mxu0 %v587
  %641 = vmatprep.subr.bf16.mxu0 0
  %642 = vmatpush1.bf16.msra.mxu0 %v588
  %643 = vmatprep.subr.bf16.mxu0 0
  %644 = vmatpush1.bf16.msra.mxu0 %v589
  %645 = vmatprep.subr.bf16.mxu0 0
  %646 = vmatpush1.bf16.msra.mxu0 %v590
  %647 = vmatprep.subr.bf16.mxu0 0
  %648 = vmatpush1.bf16.msra.mxu0 %v591
  %649 = vmatprep.subr.bf16.mxu0 0
  %650 = vmatpush1.bf16.msra.mxu0 %v592
  %651 = vmatprep.subr.bf16.mxu0 0
  %652 = vmatpush1.bf16.msra.mxu0 %v593
  %653 = vmatprep.subr.bf16.mxu0 0
  %654 = vmatpush1.bf16.msra.mxu0 %v594
  %655 = vmatprep.subr.bf16.mxu0 0
  %656 = vmatpush1.bf16.msra.mxu0 %v595
  %657 = vmatprep.subr.bf16.mxu0 0
  %658 = vmatpush1.bf16.msra.mxu0 %v596
  %659 = vmatprep.subr.bf16.mxu0 0
  %660 = vmatpush1.bf16.msra.mxu0 %v597
  %661 = vmatprep.subr.bf16.mxu0 0
  %662 = vmatpush1.bf16.msra.mxu0 %v629
  %663 = vmatprep.mubr.bf16.mxu0 %v616
  %664 = vmatmul.mubr.bf16.gmra.mrb[0].mxu0 %v507
  %v665 = vpop.f32.mrb[0].mxu0
  %v666 = vadd.f32 0.0, %v665
  %v667 = vpop.f32.mrb[0].mxu0
  %v668 = vpop.f32.mrb[0].mxu0
  %v669 = vadd.f32 0.0, %v668
  %v670 = vpop.f32.mrb[0].mxu0
  %671 = vmatprep.mubr.bf16.mxu0 %v619
  %672 = vmatmul.mubr.bf16.gmra.mrb[0].mxu0 %v509
  %v673 = vpop.f32.mrb[0].mxu0
  %v674 = vadd.f32 0.0, %v673
  %v675 = vpop.f32.mrb[0].mxu0
  %v676 = vpop.f32.mrb[0].mxu0
  %v677 = vadd.f32 0.0, %v676
  %v678 = vpop.f32.mrb[0].mxu0
  %679 = vmatprep.mubr.bf16.mxu0 %v622
  %680 = vmatmul.mubr.bf16.gmra.mrb[0].mxu0 %v511
  %v681 = vpop.f32.mrb[0].mxu0
  %v682 = vadd.f32 0.0, %v681
  %v683 = vpop.f32.mrb[0].mxu0
  %v684 = vpop.f32.mrb[0].mxu0
  %v685 = vadd.f32 0.0, %v684
  %v686 = vpop.f32.mrb[0].mxu0
  %687 = vmatprep.mubr.bf16.mxu0 %v625
  %688 = vmatmul.mubr.bf16.gmra.mrb[0].mxu0 %v513
  %v689 = vpop.f32.mrb[0].mxu0
  %v690 = vadd.f32 0.0, %v689
  %v691 = vpop.f32.mrb[0].mxu0
  %v692 = vpop.f32.mrb[0].mxu0
  %v693 = vadd.f32 0.0, %v692
  %v694 = vpop.f32.mrb[0].mxu0
  %695 = vdwg.mxu0
  %vm696 = vcmask 1045504
  %v697 = vsel %vm696, %v666, -inf
  %v698 = vrot.slane %v697, 4
  %v699 = vmax.f32 %v697, %v698
  %v700 = vrot.slane %v699, 2
  %v701 = vmax.f32 %v699, %v700
  %v702 = vrot.slane %v701, 1
  %v703 = vmax.f32 %v701, %v702
  %v704 = vsel %vm696, %v669, -inf
  %v705 = vrot.slane %v704, 4
  %v706 = vmax.f32 %v704, %v705
  %v707 = vrot.slane %v706, 2
  %v708 = vmax.f32 %v706, %v707
  %v709 = vrot.slane %v708, 1
  %v710 = vmax.f32 %v708, %v709
  %v711 = vsel %vm696, %v674, -inf
  %v712 = vrot.slane %v711, 4
  %v713 = vmax.f32 %v711, %v712
  %v714 = vrot.slane %v713, 2
  %v715 = vmax.f32 %v713, %v714
  %v716 = vrot.slane %v715, 1
  %v717 = vmax.f32 %v715, %v716
  %v718 = vsel %vm696, %v677, -inf
  %v719 = vrot.slane %v718, 4
  %v720 = vmax.f32 %v718, %v719
  %v721 = vrot.slane %v720, 2
  %v722 = vmax.f32 %v720, %v721
  %v723 = vrot.slane %v722, 1
  %v724 = vmax.f32 %v722, %v723
  %v725 = vsel %vm696, %v682, -inf
  %v726 = vrot.slane %v725, 4
  %v727 = vmax.f32 %v725, %v726
  %v728 = vrot.slane %v727, 2
  %v729 = vmax.f32 %v727, %v728
  %v730 = vrot.slane %v729, 1
  %v731 = vmax.f32 %v729, %v730
  %v732 = vsel %vm696, %v685, -inf
  %v733 = vrot.slane %v732, 4
  %v734 = vmax.f32 %v732, %v733
  %v735 = vrot.slane %v734, 2
  %v736 = vmax.f32 %v734, %v735
  %v737 = vrot.slane %v736, 1
  %v738 = vmax.f32 %v736, %v737
  %v739 = vsel %vm696, %v690, -inf
  %v740 = vrot.slane %v739, 4
  %v741 = vmax.f32 %v739, %v740
  %v742 = vrot.slane %v741, 2
  %v743 = vmax.f32 %v741, %v742
  %v744 = vrot.slane %v743, 1
  %v745 = vmax.f32 %v743, %v744
  %v746 = vsel %vm696, %v693, -inf
  %v747 = vrot.slane %v746, 4
  %v748 = vmax.f32 %v746, %v747
  %v749 = vrot.slane %v748, 2
  %v750 = vmax.f32 %v748, %v749
  %v751 = vrot.slane %v750, 1
  %v752 = vmax.f32 %v750, %v751
  %v753 = vld [vmem:[%s2] sm:$0x1]
  %v755 = vlaneseq
  %v756 = vshrl.u32 %v755, 7
  %v757 = vsub.s32 0, %v756
  %v758 = vrot.slane %v753, %v757
  %v760 = vadd.f32 %v703, %v758
  %v761 = vadd.f32 %v710, %v758
  %v762 = vadd.f32 %v717, %v758
  %v763 = vadd.f32 %v724, %v758
  %v764 = vadd.f32 %v731, %v758
  %v765 = vadd.f32 %v738, %v758
  %v766 = vadd.f32 %v745, %v758
  %v767 = vadd.f32 %v752, %v758
  %v768 = vmax.f32 %v760, 0.0
  %v769 = vmax.f32 %v761, 0.0
  %v770 = vmax.f32 %v762, 0.0
  %v771 = vmax.f32 %v763, 0.0
  %v772 = vmax.f32 %v764, 0.0
  %v773 = vmax.f32 %v765, 0.0
  %v774 = vmax.f32 %v766, 0.0
  %v775 = vmax.f32 %v767, 0.0
  %v784 = vrot.slane %v769, 7
  %vm785 = vcmask 1041409
  %v786 = vsel %vm785, %v784, %v768
  %v787 = vrot.slane %v770, 6
  %vm788 = vcmask 1042434
  %v789 = vsel %vm788, %v787, %v786
  %v790 = vrot.slane %v771, 5
  %vm791 = vcmask 1043459
  %v792 = vsel %vm791, %v790, %v789
  %v793 = vrot.slane %v772, 4
  %vm794 = vcmask 1044484
  %v795 = vsel %vm794, %v793, %v792
  %v796 = vrot.slane %v773, 3
  %vm797 = vcmask 1045509
  %v798 = vsel %vm797, %v796, %v795
  %v799 = vrot.slane %v774, 2
  %vm800 = vcmask 1046534
  %v801 = vsel %vm800, %v799, %v798
  %v802 = vrot.slane %v775, 1
  %vm803 = vcmask 1047559
  %v804 = vsel %vm803, %v802, %v801
  %806 = vst [vmem:[%s3] sm:$0xff] %v804
  // Predicated region
  $region14: #{cnn_forward.1} parent=0 // pred_check
    _
  $region15: #{cnn_forward.1} parent=0 // pred_check_branch
    %808 = sbr.rel (0) target = $region17
  $region16: #{cnn_forward.1} parent=0 // pred_region
    _
  $region17: #{cnn_forward.1} parent=0 // pred_fallthru
    _
  // Predicated region
  $region18: #{cnn_forward.1} parent=0 // pred_check
    _
  $region19: #{cnn_forward.1} parent=0 // pred_check_branch
    %810 = sbr.rel (0) target = $region21
  $region20: #{cnn_forward.1} parent=0 // pred_region
    _
  $region21: #{cnn_forward.1} parent=0 // pred_fallthru
    _

</llo_original>
